<compile_context>
chip_gen: v5e
topology: v5e:2x2
jax: 0.10.0
libtpu: 0.0.40
codegen_flags: <defaults>
</compile_context>

<pallas_src>
import functools

import jax
import jax.numpy as jnp
import numpy as np
from jax.experimental import pallas as pl
from jax.experimental.pallas import tpu as pltpu


def _convt_poly_kernel(x_ref, w_ref, b_ref, o_ref, *, S, Qh, Qw, NB, apply_relu):
    """Fused polyphase transposed conv for NB batch images.

    x_ref : (NB, S*Cin, Hp*Qw)  compute dtype  width-tap-expanded, lane-flattened input
    w_ref : (R, D)              compute dtype  fused weight, R = s*s*Cout, D = S*S*Cin
    b_ref : (R, 1)              f32            bias replicated over the s*s phases
    o_ref : (NB, R, Qh*Qw)      f32            phase-blocked, lane-dense output
    """
    w = w_ref[...]          # hoisted: shared by all NB images in this block
    b = b_ref[...]
    for n in range(NB):     # static unroll over the images of this batch block
        # im2col RHS: ceil(K/s) static lane-window slices; row-tap/col-tap/Cin fused
        # into the contraction axis, shared by every output phase.
        pieces = [x_ref[n, :, jjh * Qw:(jjh + Qh) * Qw] for jjh in range(S)]
        rhs = pieces[0] if S == 1 else jnp.concatenate(pieces, axis=0)   # (D, Qh*Qw)

        # One MXU matmul computes every kernel tap and every output phase at once.
        acc = jnp.dot(w, rhs, preferred_element_type=jnp.float32)        # (R, Qh*Qw) f32
        acc = acc + b                                                    # (R, 1) broadcast
        if apply_relu:
            acc = jnp.maximum(acc, 0.0)
        o_ref[n] = acc.astype(o_ref.dtype)


def _pick_batch_block(N, per_image_bytes, budget_bytes=8 << 20):
    """Largest divisor of N whose per-step footprint stays under the budget."""
    best = 1
    for nb in range(1, N + 1):
        if N % nb == 0 and nb * per_image_bytes <= budget_bytes:
            best = nb
    return best


def conv_transpose2d(x_nchw, weight, bias=None, *, stride=1, padding=0, act=True,
                     compute_dtype=jnp.bfloat16):
    """PyTorch-semantics ConvTranspose2d (+ bias + ReLU).  NCHW in, NCHW out.

    x_nchw : (N, Cin, H, W)
    weight : (Cin, Cout, K, K)   PyTorch ConvTranspose2d weight layout
    bias   : (Cout,) or None
    """
    N, Cin, H, W = x_nchw.shape
    wCin, Cout, K, K2 = weight.shape
    assert wCin == Cin and K == K2, "square kernels only"
    s = int(stride)
    if isinstance(padding, bool):                       # module's bool-padding shorthand
        padding = (K - 1) // 2 if padding else 0
    p = int(padding)
    assert 0 <= p <= K - 1, "padding > kernel_size - 1 not supported"

    Ho = (H - 1) * s - 2 * p + K
    Wo = (W - 1) * s - 2 * p + K
    Qh = -(-Ho // s)              # rows per output phase (short phases padded, sliced later)
    Qw = -(-Wo // s)

    # ---- polyphase bookkeeping (H and W identical: square kernel/stride/padding) ----
    # 1-D identity per axis:  y[s*q + r] = sum_j x[q + c(r) - j] * W[..., k0(r) + j*s]
    def _phase(r):
        k0 = (r + p) % s
        c = (r + p) // s
        nj = max(0, -(-(K - k0) // s)) if k0 < K else 0
        return k0, c, nj

    phases = [_phase(r) for r in range(s)]
    PL = max([0] + [nj - 1 - c for (_, c, nj) in phases])   # left zero-pad of original x
    S = max(c for (_, c, _) in phases) + PL + 1             # taps (slots) per axis = ceil(K/s)
    PRh = max(0, Qh + S - 1 - H - PL)                       # right zero-pads
    PRw = max(0, Qw + S - 1 - W - PL)
    Hp, Wp = H + PL + PRh, W + PL + PRw
    R, D = s * s * Cout, S * S * Cin

    # ---- fused polyphase weight (R, D): row = (rh*s + rw)*Cout + co,
    # col = (jjh*S + jjw)*Cin + ci.  Phase offsets are folded in here so all phases share
    # one im2col RHS in the kernel; taps that fall outside the K x K kernel are zero. ----
    zero_tap = jnp.zeros((Cin, Cout), weight.dtype)
    blocks = []
    for rh in range(s):
        kh0, ch, _ = phases[rh]
        for rw in range(s):
            kw0, cw, _ = phases[rw]
            slots = []
            for jjh in range(S):
                jh = ch + PL - jjh
                kh = kh0 + jh * s
                for jjw in range(S):
                    jw = cw + PL - jjw
                    kw = kw0 + jw * s
                    ok = (jh >= 0) and (jw >= 0) and (kh < K) and (kw < K)
                    slots.append(weight[:, :, kh, kw] if ok else zero_tap)
            w_phase = jnp.stack(slots, axis=0).reshape(D, Cout)        # (D, Cout)
            blocks.append(w_phase.T)                                   # (Cout, D)
    w_fused = jnp.concatenate(blocks, axis=0).astype(compute_dtype)    # (R, D)

    if bias is None:
        bias = jnp.zeros((Cout,), jnp.float32)
    b_fused = jnp.tile(bias.astype(jnp.float32).reshape(1, Cout),
                       (s * s, 1)).reshape(R, 1)                       # (R, 1)

    # ---- input glue: small zero-pad of the ORIGINAL image (never zero-dilated), expand
    # the ceil(K/s) width taps and flatten (H, W) so the in-kernel im2col is a pure
    # static lane-window slice and the input DMA is lane-dense. ----
    x_pad = jnp.pad(x_nchw, ((0, 0), (0, 0), (PL, PRh), (PL, PRw)))
    x_w = jnp.stack([x_pad[:, :, :, jjw:jjw + Qw] for jjw in range(S)], axis=1)
    x_w = x_w.reshape(N, S * Cin, Hp * Qw).astype(compute_dtype)       # (N, S*Cin, Hp*Qw)

    # ---- batch blocking: NB images per grid step (amortizes per-step overhead/DMA). ----
    cbytes = jnp.dtype(compute_dtype).itemsize
    per_image = 2 * (S * Cin * Hp * Qw * cbytes + R * Qh * Qw * 4)     # x2: double buffer
    NB = _pick_batch_block(N, per_image)

    kernel = functools.partial(_convt_poly_kernel, S=S, Qh=Qh, Qw=Qw, NB=NB,
                               apply_relu=act)
    out_phases = pl.pallas_call(
        kernel,
        out_shape=jax.ShapeDtypeStruct((N, R, Qh * Qw), jnp.float32),
        grid_spec=pltpu.PrefetchScalarGridSpec(
            num_scalar_prefetch=0,
            grid=(N // NB,),                             # NB images per grid step
            in_specs=[
                pl.BlockSpec((NB, S * Cin, Hp * Qw), lambda n: (n, 0, 0)),
                pl.BlockSpec((R, D), lambda n: (0, 0)),
                pl.BlockSpec((R, 1), lambda n: (0, 0)),
            ],
            out_specs=pl.BlockSpec((NB, R, Qh * Qw), lambda n: (n, 0, 0)),
        ),
        compiler_params=pltpu.CompilerParams(
            dimension_semantics=("parallel",),
            vmem_limit_bytes=32 * 1024 * 1024,
        ),
    )(x_w, w_fused, b_fused)

    # ---- interleave the s*s output phases back into NCHW (one output-sized XLA pass) ----
    out = out_phases.reshape(N, s, s, Cout, Qh, Qw)       # (n, rh, rw, co, qh, qw)
    out = jnp.transpose(out, (0, 3, 4, 1, 5, 2))           # (n, co, qh, rh, qw, rw)
    out = out.reshape(N, Cout, s * Qh, s * Qw)[:, :, :Ho, :Wo]
    return out


def _reference(x_nchw, weight, bias, *, stride, padding, act):
    """XLA reference: transposed conv = lhs-dilated conv with flipped weight (f32)."""
    N, Cin, H, W = x_nchw.shape
    _, Cout, K, _ = weight.shape
    pad = K - 1 - padding
    x = jnp.transpose(x_nchw, (0, 2, 3, 1))
    w_conv = jnp.transpose(weight[:, :, ::-1, ::-1], (2, 3, 0, 1))
    out = jax.lax.conv_general_dilated(
        x, w_conv,
        window_strides=(1, 1),
        padding=[(pad, pad), (pad, pad)],
        lhs_dilation=(stride, stride),
        dimension_numbers=("NHWC", "HWIO", "NHWC"),
    )
    out = out + bias.reshape(1, 1, 1, Cout)
    if act:
        out = jnp.maximum(out, 0.0)
    return jnp.transpose(out, (0, 3, 1, 2))


if __name__ == "__main__":
    # ConvTranspose2d(in_channels=4, out_channels=8, kernel_size=3, padding=1, stride=2,
    #                 bn=False, act=True) on a (2, 4, 16, 16) input.
    N, Cin, Cout, H, W, K = 2, 4, 8, 16, 16, 3
    stride, padding = 2, 1

    key = jax.random.PRNGKey(0)
    kx, kw, kb = jax.random.split(key, 3)
    x = jax.random.normal(kx, (N, Cin, H, W), dtype=jnp.float32)
    fan = Cin * K * K
    weight = jax.random.uniform(kw, (Cin, Cout, K, K), jnp.float32,
                                minval=-1.0, maxval=1.0) / np.sqrt(fan)
    bias = jax.random.uniform(kb, (Cout,), jnp.float32,
                              minval=-1.0, maxval=1.0) / np.sqrt(fan)

    fwd = jax.jit(functools.partial(conv_transpose2d, stride=stride, padding=padding,
                                    act=True))
    out = jax.block_until_ready(fwd(x, weight, bias))

    ref = _reference(x, weight, bias, stride=stride, padding=padding, act=True)
    # bf16 operands (f32 accumulation) vs f32 XLA reference -> loosened tolerance.
    np.testing.assert_allclose(np.asarray(out), np.asarray(ref), rtol=2e-2, atol=2e-2)

    Ho = (H - 1) * stride - 2 * padding + K
    Wo = (W - 1) * stride - 2 * padding + K
    assert out.shape == (N, Cout, Ho, Wo)
    print("KERNEL_OK")
</pallas_src>

<mosaic_0001>
module attributes {stable_mosaic.version = 11 : i64} {
  func.func @_convt_poly_kernel(%arg0: i32, %arg1: memref<2x8x272xbf16, #tpu.memory_space<vmem>>, %arg2: memref<32x16xbf16, #tpu.memory_space<vmem>>, %arg3: memref<32x1xf32, #tpu.memory_space<vmem>>, %arg4: memref<2x32x256xf32, #tpu.memory_space<vmem>>) attributes {dimension_semantics = [#tpu.dimension_semantics<parallel>], iteration_bounds = array<i64: 1>, scalar_prefetch = 0 : i64, scratch_operands = 0 : i64, tpu.core_type = #tpu.core_type<tc>, window_params = [{transform_indices = @transform_0, window_bounds = array<i64: 2, 8, 272>}, {pipeline_mode = #tpu.pipeline_mode<synchronous>, transform_indices = @transform_1, window_bounds = array<i64: 32, 16>}, {pipeline_mode = #tpu.pipeline_mode<synchronous>, transform_indices = @transform_2, window_bounds = array<i64: 32, 1>}, {transform_indices = @transform_3, window_bounds = array<i64: 2, 32, 256>}]} {
    %c0 = arith.constant 0 : index
    %c0_0 = arith.constant 0 : index
    %0 = vector.load %arg2[%c0, %c0_0] : memref<32x16xbf16, #tpu.memory_space<vmem>>, vector<32x16xbf16>
    %c0_1 = arith.constant 0 : index
    %c0_2 = arith.constant 0 : index
    %1 = vector.load %arg3[%c0_1, %c0_2] : memref<32x1xf32, #tpu.memory_space<vmem>>, vector<32x1xf32>
    %c0_3 = arith.constant 0 : index
    %c0_4 = arith.constant 0 : index
    %c0_5 = arith.constant 0 : index
    %2 = vector.load %arg1[%c0_3, %c0_4, %c0_5] : memref<2x8x272xbf16, #tpu.memory_space<vmem>>, vector<1x8x256xbf16>
    %3 = vector.shape_cast %2 : vector<1x8x256xbf16> to vector<8x256xbf16>
    %c0_6 = arith.constant 0 : index
    %c0_7 = arith.constant 0 : index
    %c16 = arith.constant 16 : index
    %4 = vector.load %arg1[%c0_6, %c0_7, %c16] : memref<2x8x272xbf16, #tpu.memory_space<vmem>>, vector<1x8x256xbf16>
    %5 = vector.shape_cast %4 : vector<1x8x256xbf16> to vector<8x256xbf16>
    %6 = tpu.concatenate %3, %5 in 0 : vector<8x256xbf16>, vector<8x256xbf16> -> vector<16x256xbf16>
    %cst = arith.constant dense<0.000000e+00> : vector<32x256xf32>
    %7 = tpu.matmul %0, %6, %cst {dimension_numbers = #tpu.dot_dimension_numbers<[1], [0], [0], [1], [0, 0, 1, 1], [], []>} : vector<32x16xbf16>, vector<16x256xbf16>, vector<32x256xf32> -> vector<32x256xf32>
    %8 = vector.broadcast %1 : vector<32x1xf32> to vector<32x256xf32>
    %9 = arith.addf %7, %8 : vector<32x256xf32>
    %cst_8 = arith.constant 0.000000e+00 : f32
    %10 = vector.broadcast %cst_8 : f32 to vector<32x256xf32>
    %11 = arith.maximumf %9, %10 : vector<32x256xf32>
    %c0_9 = arith.constant 0 : index
    %c0_10 = arith.constant 0 : index
    %c0_11 = arith.constant 0 : index
    %12 = vector.load %arg4[%c0_9, %c0_10, %c0_11] : memref<2x32x256xf32, #tpu.memory_space<vmem>>, vector<1x32x256xf32>
    %13 = vector.shape_cast %12 : vector<1x32x256xf32> to vector<32x256xf32>
    %14 = vector.shape_cast %11 : vector<32x256xf32> to vector<1x32x256xf32>
    tpu.vector_store %arg4[%c0_9, %c0_10, %c0_11], %14 {strides = array<i32>} : memref<2x32x256xf32, #tpu.memory_space<vmem>>, vector<1x32x256xf32>,
    %c1 = arith.constant 1 : index
    %c0_12 = arith.constant 0 : index
    %c0_13 = arith.constant 0 : index
    %15 = vector.load %arg1[%c1, %c0_12, %c0_13] : memref<2x8x272xbf16, #tpu.memory_space<vmem>>, vector<1x8x256xbf16>
    %16 = vector.shape_cast %15 : vector<1x8x256xbf16> to vector<8x256xbf16>
    %c1_14 = arith.constant 1 : index
    %c0_15 = arith.constant 0 : index
    %c16_16 = arith.constant 16 : index
    %17 = vector.load %arg1[%c1_14, %c0_15, %c16_16] : memref<2x8x272xbf16, #tpu.memory_space<vmem>>, vector<1x8x256xbf16>
    %18 = vector.shape_cast %17 : vector<1x8x256xbf16> to vector<8x256xbf16>
    %19 = tpu.concatenate %16, %18 in 0 : vector<8x256xbf16>, vector<8x256xbf16> -> vector<16x256xbf16>
    %cst_17 = arith.constant dense<0.000000e+00> : vector<32x256xf32>
    %20 = tpu.matmul %0, %19, %cst_17 {dimension_numbers = #tpu.dot_dimension_numbers<[1], [0], [0], [1], [0, 0, 1, 1], [], []>} : vector<32x16xbf16>, vector<16x256xbf16>, vector<32x256xf32> -> vector<32x256xf32>
    %21 = vector.broadcast %1 : vector<32x1xf32> to vector<32x256xf32>
    %22 = arith.addf %20, %21 : vector<32x256xf32>
    %cst_18 = arith.constant 0.000000e+00 : f32
    %23 = vector.broadcast %cst_18 : f32 to vector<32x256xf32>
    %24 = arith.maximumf %22, %23 : vector<32x256xf32>
    %c1_19 = arith.constant 1 : index
    %c0_20 = arith.constant 0 : index
    %c0_21 = arith.constant 0 : index
    %25 = vector.load %arg4[%c1_19, %c0_20, %c0_21] : memref<2x32x256xf32, #tpu.memory_space<vmem>>, vector<1x32x256xf32>
    %26 = vector.shape_cast %25 : vector<1x32x256xf32> to vector<32x256xf32>
    %27 = vector.shape_cast %24 : vector<32x256xf32> to vector<1x32x256xf32>
    tpu.vector_store %arg4[%c1_19, %c0_20, %c0_21], %27 {strides = array<i32>} : memref<2x32x256xf32, #tpu.memory_space<vmem>>, vector<1x32x256xf32>,
    return
  }
  func.func @transform_0(%arg0: i32) -> (i32, i32, i32) {
    %c0_i32 = arith.constant 0 : i32
    %c0_i32_0 = arith.constant 0 : i32
    %c0_i32_1 = arith.constant 0 : i32
    return %arg0, %c0_i32, %c0_i32_0 : i32, i32, i32
  }
  func.func @transform_1(%arg0: i32) -> (i32, i32) {
    %c0_i32 = arith.constant 0 : i32
    %c0_i32_0 = arith.constant 0 : i32
    %c0_i32_1 = arith.constant 0 : i32
    return %c0_i32, %c0_i32_0 : i32, i32
  }
  func.func @transform_2(%arg0: i32) -> (i32, i32) {
    %c0_i32 = arith.constant 0 : i32
    %c0_i32_0 = arith.constant 0 : i32
    %c0_i32_1 = arith.constant 0 : i32
    return %c0_i32, %c0_i32_0 : i32, i32
  }
  func.func @transform_3(%arg0: i32) -> (i32, i32, i32) {
    %c0_i32 = arith.constant 0 : i32
    %c0_i32_0 = arith.constant 0 : i32
    %c0_i32_1 = arith.constant 0 : i32
    return %arg0, %c0_i32, %c0_i32_0 : i32, i32, i32
  }
}

</mosaic_0001>

<llo_original>
// kernel: tile.6
$region0: #{tile.6}
  #allocation0 [shape = 's32[1]{0}', space=sflag, size = 0x4, scoped, tag = 'scoped memory for tile.6']
  %s0 = inlined_call_operand.vmem [shape: f32[8], index: 0, kind: input, shape index: {}]
  %s1 = inlined_call_operand.vmem [shape: f32[4,1,1,8], index: 1, kind: output, shape index: {}]
  // Predicated region
  $region2: #{tile.6} parent=0 // pred_check
    _
  $region3: #{tile.6} parent=0 // pred_check_branch
    %3 = sbr.rel (0) target = $region5
  $region4: #{tile.6} parent=0 // pred_region
    _
  $region5: #{tile.6} parent=0 // pred_fallthru
    _
  %v4 = vld [vmem:[%s0] ss:$0 sm:$0xff]
  %5 = vst [vmem:[%s1] sm:$0xf] %v4

// kernel: tile.0
$region0: #{tile.0}
  %s0 = inlined_call_operand.vmem [shape: f32[4,1,1,8], index: 0, kind: input, shape index: {}]
  %s1 = inlined_call_operand.vmem [shape: f32[32,1], index: 1, kind: output, shape index: {}]
  $region1: #{tile.0} parent=0
    #allocation0 [shape = 'u8[4096]{0}', space=vmem, size = 0x1000, scoped, tag = 'scoped mem for input reshape']
    %s3 = ssub.s32 16, 1
    %v4 = vld [vmem:[%s0] sm:%s3]
    %5 = vst [vmem:[#allocation0] sm:%s3] %v4
    %v6 = vld [vmem:[#allocation0] sm:$0xf]
    %vm7 = vcmask 7168
    %8 = vst.msk [vmem:[%s1] ss:$8 sm:$0xf] %vm7, %v6
    %v9 = vld [vmem:[#allocation0] sm:$0xf]
    %10 = vrot.lane.b32.xlu0 %v9, 127
    %v11 = vpop.permute.xlu0 %10
    %vm12 = vcmask 7168
    %s13 = scalar_lea.vmem %s1, 1
    %14 = vst.msk [vmem:[%s13] ss:$8 sm:$0xf] %vm12, %v11
    %v15 = vld [vmem:[#allocation0] sm:$0xf]
    %16 = vrot.lane.b32.xlu0 %v15, 126
    %v17 = vpop.permute.xlu0 %16
    %vm18 = vcmask 7168
    %s19 = scalar_lea.vmem %s1, 2
    %20 = vst.msk [vmem:[%s19] ss:$8 sm:$0xf] %vm18, %v17
    %v21 = vld [vmem:[#allocation0] sm:$0xf]
    %22 = vrot.lane.b32.xlu0 %v21, 125
    %v23 = vpop.permute.xlu0 %22
    %vm24 = vcmask 7168
    %s25 = scalar_lea.vmem %s1, 3
    %26 = vst.msk [vmem:[%s25] ss:$8 sm:$0xf] %vm24, %v23
    %v27 = vld [vmem:[#allocation0] sm:$0xf]
    %28 = vrot.lane.b32.xlu0 %v27, 124
    %v29 = vpop.permute.xlu0 %28
    %vm30 = vcmask 7168
    %s31 = scalar_lea.vmem %s1, 4
    %32 = vst.msk [vmem:[%s31] ss:$8 sm:$0xf] %vm30, %v29
    %v33 = vld [vmem:[#allocation0] sm:$0xf]
    %34 = vrot.lane.b32.xlu0 %v33, 123
    %v35 = vpop.permute.xlu0 %34
    %vm36 = vcmask 7168
    %s37 = scalar_lea.vmem %s1, 5
    %38 = vst.msk [vmem:[%s37] ss:$8 sm:$0xf] %vm36, %v35
    %v39 = vld [vmem:[#allocation0] sm:$0xf]
    %40 = vrot.lane.b32.xlu0 %v39, 122
    %v41 = vpop.permute.xlu0 %40
    %vm42 = vcmask 7168
    %s43 = scalar_lea.vmem %s1, 6
    %44 = vst.msk [vmem:[%s43] ss:$8 sm:$0xf] %vm42, %v41
    %v45 = vld [vmem:[#allocation0] sm:$0xf]
    %46 = vrot.lane.b32.xlu0 %v45, 121
    %v47 = vpop.permute.xlu0 %46
    %vm48 = vcmask 7168
    %s49 = scalar_lea.vmem %s1, 7
    %50 = vst.msk [vmem:[%s49] ss:$8 sm:$0xf] %vm48, %v47

// kernel: conv_transpose2d.1
$region0: #{conv_transpose2d.1}
  #allocation0 [shape = 'u32[]', space=smem, size = 0x4, offset = 0x4, fixed_abs, tag = 'smem constant byte address 0x4 - core index']
  #allocation1 [shape = 'u32[72,128]{1,0:T(1,128)}', space=vmem, size = 0x9000, scoped, tag = 'internal scratch']
  %s0 = inlined_call_operand.vmem [shape: bf16[2,8,272], index: 0, kind: input, shape index: {}]
  %s1 = inlined_call_operand.vmem [shape: bf16[32,16], index: 1, kind: input, shape index: {}]
  %s2 = inlined_call_operand.vmem [shape: f32[32,1], index: 2, kind: input, shape index: {}]
  %s3 = inlined_call_operand.vmem [shape: f32[2,32,256], index: 3, kind: output, shape index: {}]
  %s4 = sld [smem:[#allocation0]]
  $region22: #{conv_transpose2d.1} parent=0
    _
  %s6 = ssub.s32 1, %s4
  %s7 = scalar_select 0, %s6, %s4
  // Predicated region
  $region2: #{conv_transpose2d.1} parent=0 // pred_check
    _
  $region3: #{conv_transpose2d.1} parent=0 // pred_check_branch
    %9 = sbr.rel (0) target = $region5
  $region4: #{conv_transpose2d.1} parent=0 // pred_region
    _
  $region5: #{conv_transpose2d.1} parent=0 // pred_fallthru
    _
  // Predicated region
  $region6: #{conv_transpose2d.1} parent=0 // pred_check
    _
  $region7: #{conv_transpose2d.1} parent=0 // pred_check_branch
    %11 = sbr.rel (0) target = $region9
  $region8: #{conv_transpose2d.1} parent=0 // pred_region
    _
  $region9: #{conv_transpose2d.1} parent=0 // pred_fallthru
    _
  // Predicated region
  $region10: #{conv_transpose2d.1} parent=0 // pred_check
    _
  $region11: #{conv_transpose2d.1} parent=0 // pred_check_branch
    %13 = sbr.rel (0) target = $region13
  $region12: #{conv_transpose2d.1} parent=0 // pred_region
    _
  $region13: #{conv_transpose2d.1} parent=0 // pred_fallthru
    _
  %v15 = vld [vmem:[%s1] sm:$0xf]
  %v16 = vld [vmem:[%s1 + $0x4] sm:$0xf]
  %v17 = vld [vmem:[%s1 + $0x8] sm:$0xf]
  %v18 = vld [vmem:[%s1 + $0xc] sm:$0xf]
  %v19 = vld [vmem:[%s2] sm:$0xff]
  %v20 = vld [vmem:[%s2 + $0x8] sm:$0xff]
  %v21 = vld [vmem:[%s2 + $0x10] sm:$0xff]
  %v22 = vld [vmem:[%s2 + $0x18] sm:$0xff]
  %v23 = vld [vmem:[%s0] sm:$0xff]
  %v24 = vld [vmem:[%s0 + $0x8] sm:$0xf]
  %v26 = vunpack.c.l.b16 %v23
  %v27 = vunpack.c.h.b16 %v23
  %v28 = vpack.c.b16 %v26, %v26
  %v29 = vpack.c.b16 %v27, %v27
  %v31 = vunpack.c.l.b16 %v24
  %v32 = vpack.c.b16 %v31, %v31
  %33 = vrot.lane.b32.xlu0 %v28, 112
  %v34 = vpop.permute.xlu0 %33
  %35 = vrot.lane.b32.xlu0 %v29, 112
  %v36 = vpop.permute.xlu0 %35
  %37 = vrot.lane.b32.xlu0 %v32, 112
  %v38 = vpop.permute.xlu0 %37
  %vm39 = vcmask 916480
  %v40 = vsel %vm39, %v34, %v36
  %v41 = vsel %vm39, %v36, %v38
  %vm42 = vcmask 1043456
  %v45 = vsel %vm42, %v28, %v40
  %v49 = vsel %vm42, %v29, %v41
  %52 = vset.pattern.permute.xlu0 0
  %53 = vperm.xlu0 %52, %v19
  %v54 = vpop.permute.xlu0 %53
  %57 = vset.pattern.permute.xlu0 0
  %58 = vperm.xlu0 %57, %v20
  %v59 = vpop.permute.xlu0 %58
  %62 = vset.pattern.permute.xlu0 0
  %63 = vperm.xlu0 %62, %v21
  %v64 = vpop.permute.xlu0 %63
  %67 = vset.pattern.permute.xlu0 0
  %68 = vperm.xlu0 %67, %v22
  %v69 = vpop.permute.xlu0 %68
  %v75 = vunpack.c.l.b16 %v15
  %v76 = vunpack.c.l.b16 %v16
  %v77 = vunpack.c.l.b16 %v17
  %v78 = vunpack.c.l.b16 %v18
  %v79 = vpack.c.b16 %v76, %v75
  %v80 = vpack.c.b16 %v78, %v77
  %vm81 = vcmask 130048
  %v83 = vsel %vm81, %v79, 0
  %v86 = vsel %vm81, %v80, 0
  %88 = vmatpush.bf16.msra.mxu0 0
  %89 = vmatpush.bf16.msra.mxu0 0
  %90 = vmatpush.bf16.msra.mxu0 0
  %91 = vmatpush.bf16.msra.mxu0 0
  %92 = vmatpush.bf16.msra.mxu0 0
  %93 = vmatpush.bf16.msra.mxu0 0
  %94 = vmatpush.bf16.msra.mxu0 0
  %95 = vmatpush.bf16.msra.mxu0 %v45
  %96 = vmatmul.bf16.gmra.mxu0 %v83
  %v97 = vpop.f32.mrf.mxu0
  %v98 = vadd.f32 %v54, %v97
  %v99 = vpop.f32.mrf.mxu0
  %v100 = vadd.f32 %v59, %v99
  %101 = vmatmul.bf16.gmra.mxu0 %v86
  %v102 = vpop.f32.mrf.mxu0
  %v103 = vadd.f32 %v64, %v102
  %v104 = vpop.f32.mrf.mxu0
  %v105 = vadd.f32 %v69, %v104
  %106 = vdwg.mxu0
  %107 = vmatpush.bf16.msra.mxu0 0
  %108 = vmatpush.bf16.msra.mxu0 0
  %109 = vmatpush.bf16.msra.mxu0 0
  %110 = vmatpush.bf16.msra.mxu0 0
  %111 = vmatpush.bf16.msra.mxu0 0
  %112 = vmatpush.bf16.msra.mxu0 0
  %113 = vmatpush.bf16.msra.mxu0 0
  %114 = vmatpush.bf16.msra.mxu0 %v49
  %115 = vmatmul.bf16.gmra.mxu0 %v83
  %v116 = vpop.f32.mrf.mxu0
  %v117 = vadd.f32 %v54, %v116
  %v118 = vpop.f32.mrf.mxu0
  %v119 = vadd.f32 %v59, %v118
  %120 = vmatmul.bf16.gmra.mxu0 %v86
  %v121 = vpop.f32.mrf.mxu0
  %v122 = vadd.f32 %v64, %v121
  %v123 = vpop.f32.mrf.mxu0
  %v124 = vadd.f32 %v69, %v123
  %125 = vdwg.mxu0
  %v126 = vmax.f32 %v98, 0.0
  %v127 = vmax.f32 %v117, 0.0
  %v128 = vmax.f32 %v100, 0.0
  %v129 = vmax.f32 %v119, 0.0
  %v130 = vmax.f32 %v103, 0.0
  %v131 = vmax.f32 %v122, 0.0
  %v132 = vmax.f32 %v105, 0.0
  %v133 = vmax.f32 %v124, 0.0
  %134 = vst [vmem:[%s3] sm:$0xff] %v126
  %135 = vst [vmem:[%s3 + $0x8] sm:$0xff] %v127
  %136 = vst [vmem:[%s3 + $0x10] sm:$0xff] %v128
  %137 = vst [vmem:[%s3 + $0x18] sm:$0xff] %v129
  %138 = vst [vmem:[%s3 + $0x20] sm:$0xff] %v130
  %139 = vst [vmem:[%s3 + $0x28] sm:$0xff] %v131
  %140 = vst [vmem:[%s3 + $0x30] sm:$0xff] %v132
  %141 = vst [vmem:[%s3 + $0x38] sm:$0xff] %v133
  %s142 = scalar_lea.vmem %s0, 12
  %v143 = vld [vmem:[%s142] sm:$0xff]
  %v144 = vld [vmem:[%s142 + $0x8] sm:$0xf]
  %v146 = vunpack.c.l.b16 %v143
  %v147 = vunpack.c.h.b16 %v143
  %v148 = vpack.c.b16 %v146, %v146
  %v149 = vpack.c.b16 %v147, %v147
  %v151 = vunpack.c.l.b16 %v144
  %v152 = vpack.c.b16 %v151, %v151
  %153 = vrot.lane.b32.xlu0 %v148, 112
  %v154 = vpop.permute.xlu0 %153
  %155 = vrot.lane.b32.xlu0 %v149, 112
  %v156 = vpop.permute.xlu0 %155
  %157 = vrot.lane.b32.xlu0 %v152, 112
  %v158 = vpop.permute.xlu0 %157
  %v159 = vsel %vm39, %v154, %v156
  %v160 = vsel %vm39, %v156, %v158
  %v163 = vsel %vm42, %v148, %v159
  %v167 = vsel %vm42, %v149, %v160
  %169 = vmatpush.bf16.msra.mxu0 0
  %170 = vmatpush.bf16.msra.mxu0 0
  %171 = vmatpush.bf16.msra.mxu0 0
  %172 = vmatpush.bf16.msra.mxu0 0
  %173 = vmatpush.bf16.msra.mxu0 0
  %174 = vmatpush.bf16.msra.mxu0 0
  %175 = vmatpush.bf16.msra.mxu0 0
  %176 = vmatpush.bf16.msra.mxu0 %v163
  %177 = vmatmul.bf16.gmra.mxu0 %v83
  %v178 = vpop.f32.mrf.mxu0
  %v179 = vadd.f32 %v54, %v178
  %v180 = vpop.f32.mrf.mxu0
  %v181 = vadd.f32 %v59, %v180
  %182 = vmatmul.bf16.gmra.mxu0 %v86
  %v183 = vpop.f32.mrf.mxu0
  %v184 = vadd.f32 %v64, %v183
  %v185 = vpop.f32.mrf.mxu0
  %v186 = vadd.f32 %v69, %v185
  %187 = vdwg.mxu0
  %188 = vmatpush.bf16.msra.mxu0 0
  %189 = vmatpush.bf16.msra.mxu0 0
  %190 = vmatpush.bf16.msra.mxu0 0
  %191 = vmatpush.bf16.msra.mxu0 0
  %192 = vmatpush.bf16.msra.mxu0 0
  %193 = vmatpush.bf16.msra.mxu0 0
  %194 = vmatpush.bf16.msra.mxu0 0
  %195 = vmatpush.bf16.msra.mxu0 %v167
  %196 = vmatmul.bf16.gmra.mxu0 %v83
  %v197 = vpop.f32.mrf.mxu0
  %v198 = vadd.f32 %v54, %v197
  %v199 = vpop.f32.mrf.mxu0
  %v200 = vadd.f32 %v59, %v199
  %201 = vmatmul.bf16.gmra.mxu0 %v86
  %v202 = vpop.f32.mrf.mxu0
  %v203 = vadd.f32 %v64, %v202
  %v204 = vpop.f32.mrf.mxu0
  %v205 = vadd.f32 %v69, %v204
  %206 = vdwg.mxu0
  %v207 = vmax.f32 %v179, 0.0
  %v208 = vmax.f32 %v198, 0.0
  %v209 = vmax.f32 %v181, 0.0
  %v210 = vmax.f32 %v200, 0.0
  %v211 = vmax.f32 %v184, 0.0
  %v212 = vmax.f32 %v203, 0.0
  %v213 = vmax.f32 %v186, 0.0
  %v214 = vmax.f32 %v205, 0.0
  %s215 = scalar_lea.vmem %s3, 64
  %216 = vst [vmem:[%s215] sm:$0xff] %v207
  %217 = vst [vmem:[%s215 + $0x8] sm:$0xff] %v208
  %218 = vst [vmem:[%s215 + $0x10] sm:$0xff] %v209
  %219 = vst [vmem:[%s215 + $0x18] sm:$0xff] %v210
  %220 = vst [vmem:[%s215 + $0x20] sm:$0xff] %v211
  %221 = vst [vmem:[%s215 + $0x28] sm:$0xff] %v212
  %222 = vst [vmem:[%s215 + $0x30] sm:$0xff] %v213
  %223 = vst [vmem:[%s215 + $0x38] sm:$0xff] %v214
  // Predicated region
  $region14: #{conv_transpose2d.1} parent=0 // pred_check
    _
  $region15: #{conv_transpose2d.1} parent=0 // pred_check_branch
    %225 = sbr.rel (0) target = $region17
  $region16: #{conv_transpose2d.1} parent=0 // pred_region
    _
  $region17: #{conv_transpose2d.1} parent=0 // pred_fallthru
    _
  // Predicated region
  $region18: #{conv_transpose2d.1} parent=0 // pred_check
    _
  $region19: #{conv_transpose2d.1} parent=0 // pred_check_branch
    %227 = sbr.rel (0) target = $region21
  $region20: #{conv_transpose2d.1} parent=0 // pred_region
    _
  $region21: #{conv_transpose2d.1} parent=0 // pred_fallthru
    _

</llo_original>
